<compile_context>
chip_gen: v6e
topology: v6e:2x2x1
jax: 0.10.0
libtpu: 0.0.40
codegen_flags: <defaults>
</compile_context>

<pallas_src>
import functools

import jax
import jax.numpy as jnp
from jax.experimental import pallas as pl
from jax.experimental.pallas import tpu as pltpu

EPS = 1e-5  # torch.nn.BatchNorm1d default


def _round_up(a: int, b: int) -> int:
    return (a + b - 1) // b * b


def _stats_kernel(xcol_ref, w_ref, sum_ref, sq_ref):
    """Per-M-tile partial per-channel sum and sum-of-squares of the conv output."""
    y = jnp.dot(xcol_ref[...], w_ref[...],
                preferred_element_type=jnp.float32)            # (tm, Cout) f32
    sum_ref[...] = jnp.sum(y, axis=0)[None, None, :]
    sq_ref[...] = jnp.sum(y * y, axis=0)[None, None, :]


def _make_norm_kernel(apply_relu: bool):
    def kernel(xcol_ref, w_ref, scale_ref, shift_ref, o_ref):
        y = jnp.dot(xcol_ref[...], w_ref[...],
                    preferred_element_type=jnp.float32)        # (tm, Cout) f32
        out = y * scale_ref[...] + shift_ref[...]
        if apply_relu:
            out = jnp.maximum(out, 0.0)
        o_ref[...] = out
    return kernel


def _vmem_footprint(tm: int, kc: int, cout: int) -> int:
    """Approximate double-buffered per-call VMEM block footprint (bytes)."""
    xcol = 2 * tm * kc * 2          # bf16 im2col tiles (double-buffered)
    w = 2 * kc * cout * 2           # bf16 weights
    out = 2 * tm * cout * 4         # f32 output tiles
    small = 8 * cout * 4            # scale / shift / partial-stat blocks
    return xcol + w + out + small


@functools.partial(jax.jit, static_argnames=("tile_m", "activation"))
def conv1d_batchnorm_relu(x_ncl, weight, bias, gamma, beta, *,
                          tile_m: int = 2048, activation: str = "relu"):
    """Forward of Conv1d_batchnorm (training-mode BN statistics).

    x_ncl:  (N, C_in, L) float32        (PyTorch NCL layout)
    weight: (C_out, C_in, K) float32    Conv1d weight
    bias:   (C_out,)                    Conv1d bias -- exactly cancelled by the
                                        batch-mean subtraction, accepted but unused.
    gamma, beta: (C_out,)               BatchNorm1d affine parameters
    Returns (N, C_out, L) float32.
    """
    del bias  # exactly cancelled by training-mode BN's batch-mean subtraction

    N, Cin, L = x_ncl.shape
    Cout, _, K = weight.shape
    M = N * L
    KC = K * Cin

    # 'same' padding for stride=1 (PyTorch: left = (K-1)//2, right = rest).
    total_pad = K - 1
    pad_l = total_pad // 2
    pad_r = total_pad - pad_l

    # --- M tiling, sized against a conservative VMEM budget (fits v7x too) ---
    tm = max(8, _round_up(min(tile_m, M), 8))
    while tm > 8 and _vmem_footprint(tm, KC, Cout) > (20 << 20):
        tm = max(8, _round_up(tm // 2, 8))
    M_pad = _round_up(M, tm)
    num_tiles = M_pad // tm

    # --- im2col in one fused expression (k-major, cin-minor columns) ---
    x_nlc = jnp.transpose(x_ncl, (0, 2, 1)).astype(jnp.float32)     # (N, L, Cin)
    xp = jnp.pad(x_nlc, ((0, 0), (pad_l, pad_r), (0, 0)))
    xcol = jnp.concatenate([xp[:, k:k + L, :] for k in range(K)],
                           axis=-1).reshape(M, KC).astype(jnp.bfloat16)
    # Zero padded rows contribute exactly 0 to conv output and batch stats
    # (no bias), so dividing by the real M later gives exact statistics.
    xcol_p = jnp.pad(xcol, ((0, M_pad - M), (0, 0)))                # (M_pad, KC)

    # Weights: (Cout, Cin, K) -> (K*Cin, Cout), same k-major / cin-minor order.
    w2 = jnp.transpose(weight, (2, 1, 0)).reshape(KC, Cout).astype(jnp.bfloat16)

    vmem_limit = int(min(max(2 * _vmem_footprint(tm, KC, Cout) + (4 << 20),
                             32 << 20), 48 << 20))
    cparams = pltpu.CompilerParams(
        dimension_semantics=("parallel",),     # no cross-tile dependence
        vmem_limit_bytes=vmem_limit,
    )

    # --- pass 1: per-tile partial batch statistics of the conv output ---
    psum, psq = pl.pallas_call(
        _stats_kernel,
        out_shape=(
            jax.ShapeDtypeStruct((num_tiles, 1, Cout), jnp.float32),
            jax.ShapeDtypeStruct((num_tiles, 1, Cout), jnp.float32),
        ),
        grid_spec=pltpu.PrefetchScalarGridSpec(
            num_scalar_prefetch=0,
            grid=(num_tiles,),
            in_specs=[
                pl.BlockSpec((tm, KC), lambda m: (m, 0)),     # im2col tile
                pl.BlockSpec((KC, Cout), lambda m: (0, 0)),   # weights
            ],
            out_specs=(
                pl.BlockSpec((1, 1, Cout), lambda m: (m, 0, 0)),
                pl.BlockSpec((1, 1, Cout), lambda m: (m, 0, 0)),
            ),
        ),
        compiler_params=cparams,
    )(xcol_p, w2)

    # --- fold training-mode BN into one per-channel scale / shift (f32) ---
    inv_count = 1.0 / float(M)
    mean = jnp.sum(psum, axis=0) * inv_count                        # (1, Cout)
    var = jnp.maximum(jnp.sum(psq, axis=0) * inv_count - mean * mean, 0.0)
    scale = gamma[None, :].astype(jnp.float32) * jax.lax.rsqrt(var + EPS)
    shift = beta[None, :].astype(jnp.float32) - mean * scale

    # --- pass 2: conv matmul + folded BN (+ ReLU), real-Cout lane width ---
    out_p = pl.pallas_call(
        _make_norm_kernel(activation == "relu"),
        out_shape=jax.ShapeDtypeStruct((M_pad, Cout), jnp.float32),
        grid_spec=pltpu.PrefetchScalarGridSpec(
            num_scalar_prefetch=0,
            grid=(num_tiles,),
            in_specs=[
                pl.BlockSpec((tm, KC), lambda m: (m, 0)),     # im2col tile
                pl.BlockSpec((KC, Cout), lambda m: (0, 0)),   # weights
                pl.BlockSpec((1, Cout), lambda m: (0, 0)),    # BN scale
                pl.BlockSpec((1, Cout), lambda m: (0, 0)),    # BN shift
            ],
            out_specs=pl.BlockSpec((tm, Cout), lambda m: (m, 0)),
        ),
        compiler_params=cparams,
    )(xcol_p, w2, scale, shift)

    out = out_p[:M].reshape(N, L, Cout)
    return jnp.transpose(out, (0, 2, 1))        # back to PyTorch (N, Cout, L)


def _reference(x_ncl, weight, bias, gamma, beta):
    """Pure-JAX f32 reference of the PyTorch module's forward (training mode)."""
    N, Cin, L = x_ncl.shape
    Cout, _, K = weight.shape
    total = K - 1
    pad_l = total // 2
    xpad = jnp.pad(x_ncl, ((0, 0), (0, 0), (pad_l, total - pad_l)))
    y = jnp.zeros((N, Cout, L), jnp.float32)
    for k in range(K):
        y = y + jnp.einsum("ncl,oc->nol", xpad[:, :, k:k + L], weight[:, :, k])
    y = y + bias[None, :, None]
    mean = jnp.mean(y, axis=(0, 2), keepdims=True)
    var = jnp.mean((y - mean) ** 2, axis=(0, 2), keepdims=True)
    yh = (y - mean) * jax.lax.rsqrt(var + EPS)
    yh = yh * gamma[None, :, None] + beta[None, :, None]
    return jnp.maximum(yh, 0.0)


if __name__ == "__main__":
    # Small shapes consistent with the module: Conv1d input is (N, C_in, L).
    N, C_IN, C_OUT, L, K = 2, 4, 8, 16, 3

    key = jax.random.PRNGKey(0)
    kx, kw, kb, kg, kbt = jax.random.split(key, 5)

    x = jax.random.normal(kx, (N, C_IN, L), dtype=jnp.float32)
    weight = jax.random.normal(kw, (C_OUT, C_IN, K), dtype=jnp.float32) * 0.1
    bias = jax.random.normal(kb, (C_OUT,), dtype=jnp.float32) * 0.1
    gamma = 1.0 + 0.1 * jax.random.normal(kg, (C_OUT,), dtype=jnp.float32)
    beta = 0.1 * jax.random.normal(kbt, (C_OUT,), dtype=jnp.float32)

    out = conv1d_batchnorm_relu(x, weight, bias, gamma, beta)
    out = jax.block_until_ready(out)

    assert out.shape == (N, C_OUT, L), out.shape
    assert bool(jnp.all(jnp.isfinite(out)))

    ref = _reference(x, weight, bias, gamma, beta)
    max_err = float(jnp.max(jnp.abs(out - ref)))
    assert max_err < 5e-2, f"max abs err vs f32 reference = {max_err}"

    print("KERNEL_OK")
</pallas_src>

<mosaic_0001>
module attributes {stable_mosaic.version = 11 : i64} {
  func.func @kernel(%arg0: i32, %arg1: memref<32x12xbf16, #tpu.memory_space<vmem>>, %arg2: memref<12x8xbf16, #tpu.memory_space<vmem>>, %arg3: memref<1x8xf32, #tpu.memory_space<vmem>>, %arg4: memref<1x8xf32, #tpu.memory_space<vmem>>, %arg5: memref<32x8xf32, #tpu.memory_space<vmem>>) attributes {dimension_semantics = [#tpu.dimension_semantics<parallel>], iteration_bounds = array<i64: 1>, scalar_prefetch = 0 : i64, scratch_operands = 0 : i64, tpu.core_type = #tpu.core_type<tc>, window_params = [{transform_indices = @transform_0, window_bounds = array<i64: 32, 12>}, {pipeline_mode = #tpu.pipeline_mode<synchronous>, transform_indices = @transform_1, window_bounds = array<i64: 12, 8>}, {pipeline_mode = #tpu.pipeline_mode<synchronous>, transform_indices = @transform_2, window_bounds = array<i64: 1, 8>}, {pipeline_mode = #tpu.pipeline_mode<synchronous>, transform_indices = @transform_3, window_bounds = array<i64: 1, 8>}, {transform_indices = @transform_4, window_bounds = array<i64: 32, 8>}]} {
    %c0 = arith.constant 0 : index
    %c0_0 = arith.constant 0 : index
    %0 = vector.load %arg1[%c0, %c0_0] : memref<32x12xbf16, #tpu.memory_space<vmem>>, vector<32x12xbf16>
    %c0_1 = arith.constant 0 : index
    %c0_2 = arith.constant 0 : index
    %1 = vector.load %arg2[%c0_1, %c0_2] : memref<12x8xbf16, #tpu.memory_space<vmem>>, vector<12x8xbf16>
    %cst = arith.constant dense<0.000000e+00> : vector<32x8xf32>
    %2 = tpu.matmul %0, %1, %cst {dimension_numbers = #tpu.dot_dimension_numbers<[1], [0], [0], [1], [0, 0, 1, 1], [], []>} : vector<32x12xbf16>, vector<12x8xbf16>, vector<32x8xf32> -> vector<32x8xf32>
    %c0_3 = arith.constant 0 : index
    %c0_4 = arith.constant 0 : index
    %3 = vector.load %arg3[%c0_3, %c0_4] : memref<1x8xf32, #tpu.memory_space<vmem>>, vector<1x8xf32>
    %4 = vector.broadcast %3 : vector<1x8xf32> to vector<32x8xf32>
    %5 = arith.mulf %2, %4 : vector<32x8xf32>
    %c0_5 = arith.constant 0 : index
    %c0_6 = arith.constant 0 : index
    %6 = vector.load %arg4[%c0_5, %c0_6] : memref<1x8xf32, #tpu.memory_space<vmem>>, vector<1x8xf32>
    %7 = vector.broadcast %6 : vector<1x8xf32> to vector<32x8xf32>
    %8 = arith.addf %5, %7 : vector<32x8xf32>
    %cst_7 = arith.constant 0.000000e+00 : f32
    %9 = vector.broadcast %cst_7 : f32 to vector<32x8xf32>
    %10 = arith.maximumf %8, %9 : vector<32x8xf32>
    %c0_8 = arith.constant 0 : index
    %c0_9 = arith.constant 0 : index
    %11 = vector.load %arg5[%c0_8, %c0_9] : memref<32x8xf32, #tpu.memory_space<vmem>>, vector<32x8xf32>
    tpu.vector_store %arg5[%c0_8, %c0_9], %10 {strides = array<i32>} : memref<32x8xf32, #tpu.memory_space<vmem>>, vector<32x8xf32>,
    return
  }
  func.func @transform_0(%arg0: i32) -> (i32, i32) {
    %c0_i32 = arith.constant 0 : i32
    %c0_i32_0 = arith.constant 0 : i32
    return %arg0, %c0_i32 : i32, i32
  }
  func.func @transform_1(%arg0: i32) -> (i32, i32) {
    %c0_i32 = arith.constant 0 : i32
    %c0_i32_0 = arith.constant 0 : i32
    %c0_i32_1 = arith.constant 0 : i32
    return %c0_i32, %c0_i32_0 : i32, i32
  }
  func.func @transform_2(%arg0: i32) -> (i32, i32) {
    %c0_i32 = arith.constant 0 : i32
    %c0_i32_0 = arith.constant 0 : i32
    %c0_i32_1 = arith.constant 0 : i32
    return %c0_i32, %c0_i32_0 : i32, i32
  }
  func.func @transform_3(%arg0: i32) -> (i32, i32) {
    %c0_i32 = arith.constant 0 : i32
    %c0_i32_0 = arith.constant 0 : i32
    %c0_i32_1 = arith.constant 0 : i32
    return %c0_i32, %c0_i32_0 : i32, i32
  }
  func.func @transform_4(%arg0: i32) -> (i32, i32) {
    %c0_i32 = arith.constant 0 : i32
    %c0_i32_0 = arith.constant 0 : i32
    return %arg0, %c0_i32 : i32, i32
  }
}

module attributes {stable_mosaic.version = 11 : i64} {
  func.func @_stats_kernel(%arg0: i32, %arg1: memref<32x12xbf16, #tpu.memory_space<vmem>>, %arg2: memref<12x8xbf16, #tpu.memory_space<vmem>>, %arg3: memref<1x1x8xf32, #tpu.memory_space<vmem>>, %arg4: memref<1x1x8xf32, #tpu.memory_space<vmem>>) attributes {dimension_semantics = [#tpu.dimension_semantics<parallel>], iteration_bounds = array<i64: 1>, scalar_prefetch = 0 : i64, scratch_operands = 0 : i64, tpu.core_type = #tpu.core_type<tc>, window_params = [{transform_indices = @transform_0, window_bounds = array<i64: 32, 12>}, {pipeline_mode = #tpu.pipeline_mode<synchronous>, transform_indices = @transform_1, window_bounds = array<i64: 12, 8>}, {transform_indices = @transform_2, window_bounds = array<i64: 1, 1, 8>}, {transform_indices = @transform_3, window_bounds = array<i64: 1, 1, 8>}]} {
    %c0 = arith.constant 0 : index
    %c0_0 = arith.constant 0 : index
    %0 = vector.load %arg1[%c0, %c0_0] : memref<32x12xbf16, #tpu.memory_space<vmem>>, vector<32x12xbf16>
    %c0_1 = arith.constant 0 : index
    %c0_2 = arith.constant 0 : index
    %1 = vector.load %arg2[%c0_1, %c0_2] : memref<12x8xbf16, #tpu.memory_space<vmem>>, vector<12x8xbf16>
    %cst = arith.constant dense<0.000000e+00> : vector<32x8xf32>
    %2 = tpu.matmul %0, %1, %cst {dimension_numbers = #tpu.dot_dimension_numbers<[1], [0], [0], [1], [0, 0, 1, 1], [], []>} : vector<32x12xbf16>, vector<12x8xbf16>, vector<32x8xf32> -> vector<32x8xf32>
    %cst_3 = arith.constant dense<0.000000e+00> : vector<8xf32>
    %3 = vector.multi_reduction <add>, %2, %cst_3 [0] : vector<32x8xf32> to vector<8xf32>
    %4 = vector.shape_cast %3 : vector<8xf32> to vector<1x1x8xf32>
    %c0_4 = arith.constant 0 : index
    %c0_5 = arith.constant 0 : index
    %c0_6 = arith.constant 0 : index
    %5 = vector.load %arg3[%c0_4, %c0_5, %c0_6] : memref<1x1x8xf32, #tpu.memory_space<vmem>>, vector<1x1x8xf32>
    tpu.vector_store %arg3[%c0_4, %c0_5, %c0_6], %4 {strides = array<i32>} : memref<1x1x8xf32, #tpu.memory_space<vmem>>, vector<1x1x8xf32>,
    %6 = arith.mulf %2, %2 : vector<32x8xf32>
    %cst_7 = arith.constant dense<0.000000e+00> : vector<8xf32>
    %7 = vector.multi_reduction <add>, %6, %cst_7 [0] : vector<32x8xf32> to vector<8xf32>
    %8 = vector.shape_cast %7 : vector<8xf32> to vector<1x1x8xf32>
    %c0_8 = arith.constant 0 : index
    %c0_9 = arith.constant 0 : index
    %c0_10 = arith.constant 0 : index
    %9 = vector.load %arg4[%c0_8, %c0_9, %c0_10] : memref<1x1x8xf32, #tpu.memory_space<vmem>>, vector<1x1x8xf32>
    tpu.vector_store %arg4[%c0_8, %c0_9, %c0_10], %8 {strides = array<i32>} : memref<1x1x8xf32, #tpu.memory_space<vmem>>, vector<1x1x8xf32>,
    return
  }
  func.func @transform_0(%arg0: i32) -> (i32, i32) {
    %c0_i32 = arith.constant 0 : i32
    %c0_i32_0 = arith.constant 0 : i32
    return %arg0, %c0_i32 : i32, i32
  }
  func.func @transform_1(%arg0: i32) -> (i32, i32) {
    %c0_i32 = arith.constant 0 : i32
    %c0_i32_0 = arith.constant 0 : i32
    %c0_i32_1 = arith.constant 0 : i32
    return %c0_i32, %c0_i32_0 : i32, i32
  }
  func.func @transform_2(%arg0: i32) -> (i32, i32, i32) {
    %c0_i32 = arith.constant 0 : i32
    %c0_i32_0 = arith.constant 0 : i32
    %c0_i32_1 = arith.constant 0 : i32
    return %arg0, %c0_i32, %c0_i32_0 : i32, i32, i32
  }
  func.func @transform_3(%arg0: i32) -> (i32, i32, i32) {
    %c0_i32 = arith.constant 0 : i32
    %c0_i32_0 = arith.constant 0 : i32
    %c0_i32_1 = arith.constant 0 : i32
    return %arg0, %c0_i32, %c0_i32_0 : i32, i32, i32
  }
}

</mosaic_0001>

<llo_original>
// kernel: conv1d_batchnorm_relu.3
$region0: #{conv1d_batchnorm_relu.3}
  #allocation0 [shape = 'u32[]', space=smem, size = 0x4, offset = 0x4, fixed_abs, tag = 'smem constant byte address 0x4 - core index']
  #allocation1 [shape = 'u32[144,128]{1,0:T(1,128)}', space=vmem, size = 0x12000, scoped, tag = 'internal scratch']
  %s0 = inlined_call_operand.vmem [shape: bf16[32,12], index: 0, kind: input, shape index: {}]
  %s1 = inlined_call_operand.vmem [shape: bf16[12,8], index: 1, kind: input, shape index: {}]
  %s2 = inlined_call_operand.vmem [shape: f32[1,8], index: 2, kind: input, shape index: {}]
  %s3 = inlined_call_operand.vmem [shape: f32[1,8], index: 3, kind: input, shape index: {}]
  %s4 = inlined_call_operand.vmem [shape: f32[32,8], index: 4, kind: output, shape index: {}]
  %s5 = sld [smem:[#allocation0]]
  $region26: #{conv1d_batchnorm_relu.3} parent=0
    _
  %s7 = ssub.s32 1, %s5
  %s8 = scalar_select 0, %s7, %s5
  // Predicated region
  $region2: #{conv1d_batchnorm_relu.3} parent=0 // pred_check
    _
  $region3: #{conv1d_batchnorm_relu.3} parent=0 // pred_check_branch
    %10 = sbr.rel (0) target = $region5
  $region4: #{conv1d_batchnorm_relu.3} parent=0 // pred_region
    _
  $region5: #{conv1d_batchnorm_relu.3} parent=0 // pred_fallthru
    _
  // Predicated region
  $region6: #{conv1d_batchnorm_relu.3} parent=0 // pred_check
    _
  $region7: #{conv1d_batchnorm_relu.3} parent=0 // pred_check_branch
    %12 = sbr.rel (0) target = $region9
  $region8: #{conv1d_batchnorm_relu.3} parent=0 // pred_region
    _
  $region9: #{conv1d_batchnorm_relu.3} parent=0 // pred_fallthru
    _
  // Predicated region
  $region10: #{conv1d_batchnorm_relu.3} parent=0 // pred_check
    _
  $region11: #{conv1d_batchnorm_relu.3} parent=0 // pred_check_branch
    %14 = sbr.rel (0) target = $region13
  $region12: #{conv1d_batchnorm_relu.3} parent=0 // pred_region
    _
  $region13: #{conv1d_batchnorm_relu.3} parent=0 // pred_fallthru
    _
  // Predicated region
  $region14: #{conv1d_batchnorm_relu.3} parent=0 // pred_check
    _
  $region15: #{conv1d_batchnorm_relu.3} parent=0 // pred_check_branch
    %16 = sbr.rel (0) target = $region17
  $region16: #{conv1d_batchnorm_relu.3} parent=0 // pred_region
    _
  $region17: #{conv1d_batchnorm_relu.3} parent=0 // pred_fallthru
    _
  %v18 = vld [vmem:[%s0] sm:$0xf]
  %v19 = vld [vmem:[%s0 + $0x4] sm:$0xf]
  %v20 = vld [vmem:[%s0 + $0x8] sm:$0xf]
  %v21 = vld [vmem:[%s0 + $0xc] sm:$0xf]
  %v22 = vld [vmem:[%s1] sm:$0xf]
  %v23 = vld [vmem:[%s1 + $0x4] sm:$0x3]
  %v28 = vunpack.c.l.b16 %v18
  %v29 = vunpack.c.l.b16 %v19
  %v30 = vunpack.c.l.b16 %v20
  %v31 = vunpack.c.l.b16 %v21
  %v32 = vpack.c.b16 %v29, %v28
  %v33 = vpack.c.b16 %v31, %v30
  %v36 = vunpack.c.l.b16 %v22
  %v37 = vunpack.c.l.b16 %v23
  %v38 = vpack.c.b16 %v37, %v36
  %vm39 = vcmask 97280
  %v41 = vsel %vm39, %v32, 0
  %v44 = vsel %vm39, %v33, 0
  %vm46 = vcmask 1045504
  %v48 = vsel %vm46, %v38, 0
  %50 = vmatprep.subr.bf16.mxu0 0
  %51 = vmatpush1.bf16.msra.mxu0 0
  %52 = vmatprep.subr.bf16.mxu0 0
  %53 = vmatpush1.bf16.msra.mxu0 0
  %54 = vmatprep.subr.bf16.mxu0 0
  %55 = vmatpush1.bf16.msra.mxu0 0
  %56 = vmatprep.subr.bf16.mxu0 0
  %57 = vmatpush1.bf16.msra.mxu0 0
  %58 = vmatprep.subr.bf16.mxu0 0
  %59 = vmatpush1.bf16.msra.mxu0 0
  %60 = vmatprep.subr.bf16.mxu0 0
  %61 = vmatpush1.bf16.msra.mxu0 0
  %62 = vmatprep.subr.bf16.mxu0 0
  %63 = vmatpush1.bf16.msra.mxu0 0
  %64 = vmatprep.subr.bf16.mxu0 0
  %65 = vmatpush1.bf16.msra.mxu0 %v48
  %66 = vmatprep.subr.bf16.mxu0 0
  %67 = vmatpush2.bf16.msra.mxu0 0
  %68 = vmatprep.subr.bf16.mxu0 0
  %69 = vmatpush2.bf16.msra.mxu0 0
  %70 = vmatprep.subr.bf16.mxu0 0
  %71 = vmatpush2.bf16.msra.mxu0 0
  %72 = vmatprep.subr.bf16.mxu0 0
  %73 = vmatpush2.bf16.msra.mxu0 0
  %74 = vmatprep.subr.bf16.mxu0 0
  %75 = vmatpush2.bf16.msra.mxu0 0
  %76 = vmatprep.subr.bf16.mxu0 0
  %77 = vmatpush2.bf16.msra.mxu0 0
  %78 = vmatprep.subr.bf16.mxu0 0
  %79 = vmatpush2.bf16.msra.mxu0 0
  %80 = vmatprep.subr.bf16.mxu0 0
  %81 = vmatpush2.bf16.msra.mxu0 0
  %82 = vmatprep.mubr.bf16.mxu0 0
  %83 = vmatmul.mubr.bf16.gmra.mxu0 %v41
  %v84 = vpop.f32.mrf.mxu0
  %v85 = vadd.f32 0.0, %v84
  %v86 = vpop.f32.mrf.mxu0
  %v87 = vpop.f32.mrf.mxu0
  %v88 = vadd.f32 0.0, %v87
  %v89 = vpop.f32.mrf.mxu0
  %90 = vmatprep.mubr.bf16.mxu0 0
  %91 = vmatmul.mubr.bf16.gmra.mxu0 %v44
  %v92 = vpop.f32.mrf.mxu0
  %v93 = vadd.f32 0.0, %v92
  %v94 = vpop.f32.mrf.mxu0
  %v95 = vpop.f32.mrf.mxu0
  %v96 = vadd.f32 0.0, %v95
  %v97 = vpop.f32.mrf.mxu0
  %98 = vdwg.mxu0
  %v99 = vld [vmem:[%s2] sm:$0x1]
  %v101 = vlaneseq
  %v102 = vshrl.u32 %v101, 7
  %v103 = vsub.s32 0, %v102
  %v104 = vrot.slane %v99, %v103
  %v106 = vmul.f32 %v85, %v104
  %v107 = vmul.f32 %v88, %v104
  %v108 = vmul.f32 %v93, %v104
  %v109 = vmul.f32 %v96, %v104
  %v110 = vld [vmem:[%s3] sm:$0x1]
  %v112 = vlaneseq
  %v113 = vshrl.u32 %v112, 7
  %v114 = vsub.s32 0, %v113
  %v115 = vrot.slane %v110, %v114
  %v117 = vadd.f32 %v106, %v115
  %v118 = vadd.f32 %v107, %v115
  %v119 = vadd.f32 %v108, %v115
  %v120 = vadd.f32 %v109, %v115
  %v121 = vmax.f32 %v117, 0.0
  %v122 = vmax.f32 %v118, 0.0
  %v123 = vmax.f32 %v119, 0.0
  %v124 = vmax.f32 %v120, 0.0
  %vm125 = vcmask 64512
  %126 = vst.msk [vmem:[%s4] sm:$0xff] %vm125, %v121
  %127 = vst.msk [vmem:[%s4 + $0x8] sm:$0xff] %vm125, %v122
  %128 = vst.msk [vmem:[%s4 + $0x10] sm:$0xff] %vm125, %v123
  %129 = vst.msk [vmem:[%s4 + $0x18] sm:$0xff] %vm125, %v124
  // Predicated region
  $region18: #{conv1d_batchnorm_relu.3} parent=0 // pred_check
    _
  $region19: #{conv1d_batchnorm_relu.3} parent=0 // pred_check_branch
    %131 = sbr.rel (0) target = $region21
  $region20: #{conv1d_batchnorm_relu.3} parent=0 // pred_region
    _
  $region21: #{conv1d_batchnorm_relu.3} parent=0 // pred_fallthru
    _
  // Predicated region
  $region22: #{conv1d_batchnorm_relu.3} parent=0 // pred_check
    _
  $region23: #{conv1d_batchnorm_relu.3} parent=0 // pred_check_branch
    %133 = sbr.rel (0) target = $region25
  $region24: #{conv1d_batchnorm_relu.3} parent=0 // pred_region
    _
  $region25: #{conv1d_batchnorm_relu.3} parent=0 // pred_fallthru
    _

// kernel: conv1d_batchnorm_relu.2
$region0: #{conv1d_batchnorm_relu.2}
  #allocation0 [shape = 'u32[]', space=smem, size = 0x4, offset = 0x4, fixed_abs, tag = 'smem constant byte address 0x4 - core index']
  #allocation1 [shape = 'u32[144,128]{1,0:T(1,128)}', space=vmem, size = 0x12000, scoped, tag = 'internal scratch']
  %s0 = inlined_call_operand.vmem [shape: bf16[32,12], index: 0, kind: input, shape index: {}]
  %s1 = inlined_call_operand.vmem [shape: bf16[12,8], index: 1, kind: input, shape index: {}]
  %s2 = inlined_call_operand.vmem [shape: f32[1,1,8], index: 2, kind: output, shape index: {0}]
  %s3 = inlined_call_operand.vmem [shape: f32[1,1,8], index: 3, kind: output, shape index: {1}]
  %4 = xla_tuple %s2, %s3
  %s5 = sld [smem:[#allocation0]]
  $region26: #{conv1d_batchnorm_relu.2} parent=0
    _
  %s7 = ssub.s32 1, %s5
  %s8 = scalar_select 0, %s7, %s5
  // Predicated region
  $region2: #{conv1d_batchnorm_relu.2} parent=0 // pred_check
    _
  $region3: #{conv1d_batchnorm_relu.2} parent=0 // pred_check_branch
    %10 = sbr.rel (0) target = $region5
  $region4: #{conv1d_batchnorm_relu.2} parent=0 // pred_region
    _
  $region5: #{conv1d_batchnorm_relu.2} parent=0 // pred_fallthru
    _
  // Predicated region
  $region6: #{conv1d_batchnorm_relu.2} parent=0 // pred_check
    _
  $region7: #{conv1d_batchnorm_relu.2} parent=0 // pred_check_branch
    %12 = sbr.rel (0) target = $region9
  $region8: #{conv1d_batchnorm_relu.2} parent=0 // pred_region
    _
  $region9: #{conv1d_batchnorm_relu.2} parent=0 // pred_fallthru
    _
  %v14 = vld [vmem:[%s0] sm:$0xf]
  %v15 = vld [vmem:[%s0 + $0x4] sm:$0xf]
  %v16 = vld [vmem:[%s0 + $0x8] sm:$0xf]
  %v17 = vld [vmem:[%s0 + $0xc] sm:$0xf]
  %v18 = vld [vmem:[%s1] sm:$0xf]
  %v19 = vld [vmem:[%s1 + $0x4] sm:$0x3]
  %v24 = vunpack.c.l.b16 %v14
  %v25 = vunpack.c.l.b16 %v15
  %v26 = vunpack.c.l.b16 %v16
  %v27 = vunpack.c.l.b16 %v17
  %v28 = vpack.c.b16 %v25, %v24
  %v29 = vpack.c.b16 %v27, %v26
  %v32 = vunpack.c.l.b16 %v18
  %v33 = vunpack.c.l.b16 %v19
  %v34 = vpack.c.b16 %v33, %v32
  %vm35 = vcmask 97280
  %v37 = vsel %vm35, %v28, 0
  %v40 = vsel %vm35, %v29, 0
  %vm42 = vcmask 1045504
  %v44 = vsel %vm42, %v34, 0
  %46 = vmatprep.subr.bf16.mxu0 0
  %47 = vmatpush1.bf16.msra.mxu0 0
  %48 = vmatprep.subr.bf16.mxu0 0
  %49 = vmatpush1.bf16.msra.mxu0 0
  %50 = vmatprep.subr.bf16.mxu0 0
  %51 = vmatpush1.bf16.msra.mxu0 0
  %52 = vmatprep.subr.bf16.mxu0 0
  %53 = vmatpush1.bf16.msra.mxu0 0
  %54 = vmatprep.subr.bf16.mxu0 0
  %55 = vmatpush1.bf16.msra.mxu0 0
  %56 = vmatprep.subr.bf16.mxu0 0
  %57 = vmatpush1.bf16.msra.mxu0 0
  %58 = vmatprep.subr.bf16.mxu0 0
  %59 = vmatpush1.bf16.msra.mxu0 0
  %60 = vmatprep.subr.bf16.mxu0 0
  %61 = vmatpush1.bf16.msra.mxu0 %v44
  %62 = vmatprep.subr.bf16.mxu0 0
  %63 = vmatpush2.bf16.msra.mxu0 0
  %64 = vmatprep.subr.bf16.mxu0 0
  %65 = vmatpush2.bf16.msra.mxu0 0
  %66 = vmatprep.subr.bf16.mxu0 0
  %67 = vmatpush2.bf16.msra.mxu0 0
  %68 = vmatprep.subr.bf16.mxu0 0
  %69 = vmatpush2.bf16.msra.mxu0 0
  %70 = vmatprep.subr.bf16.mxu0 0
  %71 = vmatpush2.bf16.msra.mxu0 0
  %72 = vmatprep.subr.bf16.mxu0 0
  %73 = vmatpush2.bf16.msra.mxu0 0
  %74 = vmatprep.subr.bf16.mxu0 0
  %75 = vmatpush2.bf16.msra.mxu0 0
  %76 = vmatprep.subr.bf16.mxu0 0
  %77 = vmatpush2.bf16.msra.mxu0 0
  %78 = vmatprep.mubr.bf16.mxu0 0
  %79 = vmatmul.mubr.bf16.gmra.mxu0 %v37
  %v80 = vpop.f32.mrf.mxu0
  %v81 = vadd.f32 0.0, %v80
  %v82 = vpop.f32.mrf.mxu0
  %v83 = vpop.f32.mrf.mxu0
  %v84 = vadd.f32 0.0, %v83
  %v85 = vpop.f32.mrf.mxu0
  %86 = vmatprep.mubr.bf16.mxu0 0
  %87 = vmatmul.mubr.bf16.gmra.mxu0 %v40
  %v88 = vpop.f32.mrf.mxu0
  %v89 = vadd.f32 0.0, %v88
  %v90 = vpop.f32.mrf.mxu0
  %v91 = vpop.f32.mrf.mxu0
  %v92 = vadd.f32 0.0, %v91
  %v93 = vpop.f32.mrf.mxu0
  %94 = vdwg.mxu0
  %vm95 = vcmask 64512
  %v96 = vsel %vm95, %v81, 0.0
  %v97 = vsel %vm95, %v84, 0.0
  %v98 = vadd.f32 %v96, %v97
  %v99 = vsel %vm95, %v89, 0.0
  %v100 = vadd.f32 %v98, %v99
  %v101 = vsel %vm95, %v92, 0.0
  %v102 = vadd.f32 %v100, %v101
  %v103 = vrot.slane %v102, 4
  %v104 = vadd.f32 %v102, %v103
  %v105 = vrot.slane %v104, 2
  %v106 = vadd.f32 %v104, %v105
  %v107 = vrot.slane %v106, 1
  %v108 = vadd.f32 %v106, %v107
  %vm109 = vcmask 57344
  %110 = vst.msk [vmem:[%s2] sm:$0x1] %vm109, %v108
  %v111 = vmul.f32 %v81, %v81
  %v112 = vmul.f32 %v84, %v84
  %v113 = vmul.f32 %v89, %v89
  %v114 = vmul.f32 %v92, %v92
  %v115 = vsel %vm95, %v111, 0.0
  %v116 = vsel %vm95, %v112, 0.0
  %v117 = vadd.f32 %v115, %v116
  %v118 = vsel %vm95, %v113, 0.0
  %v119 = vadd.f32 %v117, %v118
  %v120 = vsel %vm95, %v114, 0.0
  %v121 = vadd.f32 %v119, %v120
  %v122 = vrot.slane %v121, 4
  %v123 = vadd.f32 %v121, %v122
  %v124 = vrot.slane %v123, 2
  %v125 = vadd.f32 %v123, %v124
  %v126 = vrot.slane %v125, 1
  %v127 = vadd.f32 %v125, %v126
  %128 = vst.msk [vmem:[%s3] sm:$0x1] %vm109, %v127
  // Predicated region
  $region10: #{conv1d_batchnorm_relu.2} parent=0 // pred_check
    _
  $region11: #{conv1d_batchnorm_relu.2} parent=0 // pred_check_branch
    %130 = sbr.rel (0) target = $region13
  $region12: #{conv1d_batchnorm_relu.2} parent=0 // pred_region
    _
  $region13: #{conv1d_batchnorm_relu.2} parent=0 // pred_fallthru
    _
  // Predicated region
  $region14: #{conv1d_batchnorm_relu.2} parent=0 // pred_check
    _
  $region15: #{conv1d_batchnorm_relu.2} parent=0 // pred_check_branch
    %132 = sbr.rel (0) target = $region17
  $region16: #{conv1d_batchnorm_relu.2} parent=0 // pred_region
    _
  $region17: #{conv1d_batchnorm_relu.2} parent=0 // pred_fallthru
    _
  // Predicated region
  $region18: #{conv1d_batchnorm_relu.2} parent=0 // pred_check
    _
  $region19: #{conv1d_batchnorm_relu.2} parent=0 // pred_check_branch
    %134 = sbr.rel (0) target = $region21
  $region20: #{conv1d_batchnorm_relu.2} parent=0 // pred_region
    _
  $region21: #{conv1d_batchnorm_relu.2} parent=0 // pred_fallthru
    _
  // Predicated region
  $region22: #{conv1d_batchnorm_relu.2} parent=0 // pred_check
    _
  $region23: #{conv1d_batchnorm_relu.2} parent=0 // pred_check_branch
    %136 = sbr.rel (0) target = $region25
  $region24: #{conv1d_batchnorm_relu.2} parent=0 // pred_region
    _
  $region25: #{conv1d_batchnorm_relu.2} parent=0 // pred_fallthru
    _

</llo_original>
